<compile_context>
chip_gen: v6e
topology: v6e:2x2x1
jax: 0.10.0
libtpu: 0.0.40
codegen_flags: <defaults>
</compile_context>

<pallas_src>
import functools

import jax
import jax.numpy as jnp
from jax.experimental import pallas as pl
from jax.experimental.pallas import tpu as pltpu


def _vae_kernel(x_ref, eps_ref,
                w1_ref, b1_ref,
                wml_ref, bml_ref,
                wd1_ref, bd1_ref,
                wd2_ref, bd2_ref,
                out_ref, *, latent_dim):
    mxu_dt = w1_ref.dtype          # f32 or bf16 (I/O dtype of the weights)
    x = x_ref[...]

    # encoder layer 1 + relu (f32 accumulation / elementwise)
    h1 = jnp.dot(x, w1_ref[...], preferred_element_type=jnp.float32) + b1_ref[...]
    h1 = jnp.maximum(h1, 0.0)

    # fused mu|logvar head: one matmul, split the columns afterwards
    ml = jnp.dot(h1.astype(mxu_dt), wml_ref[...],
                 preferred_element_type=jnp.float32) + bml_ref[...]
    mu = ml[:, :latent_dim]
    logvar = ml[:, latent_dim:]

    # reparameterization: z = mu + eps * exp(0.5 * logvar)  (f32)
    z = mu + eps_ref[...].astype(jnp.float32) * jnp.exp(0.5 * logvar)

    # decoder layer 1 + relu
    d1 = jnp.dot(z.astype(mxu_dt), wd1_ref[...],
                 preferred_element_type=jnp.float32) + bd1_ref[...]
    d1 = jnp.maximum(d1, 0.0)

    # decoder layer 2 (reconstruction)
    recon = jnp.dot(d1.astype(mxu_dt), wd2_ref[...],
                    preferred_element_type=jnp.float32) + bd2_ref[...]

    # single lane-dense output slab: recon | mu | logvar | z
    out_ref[...] = jnp.concatenate([recon, mu, logvar, z], axis=-1).astype(out_ref.dtype)


def _choose_tile(n_rows_total, tile_m):
    """Row tile: multiple of 8, <= tile_m, and >= 2 grid steps when possible."""
    tm = max(8, min(tile_m, ((n_rows_total + 7) // 8) * 8))
    tm = max(8, (tm // 8) * 8)
    if tm >= n_rows_total and n_rows_total > 8:
        # split so the ("parallel",) grid axis has >= 2 steps (v7x dual-TC)
        tm = max(8, (((n_rows_total + 1) // 2 + 7) // 8) * 8)
    return tm


def flatten_state_autoencoder_forward(node_features, adj_list, eps, params,
                                      *, n_agents, latent_dim,
                                      tile_m=512, io_dtype=jnp.float32):
    """node_features: (bs, sl, n_agents, input_dim) float32
       adj_list:      (bs, sl, n_agents, n_agents)  (unused by this module variant)
       eps:           (bs, sl, n_agents, latent_dim) standard-normal noise
    Returns (recon, mu_flat, logvar_flat, z_flat) matching the torch module."""
    bs, sl, na, input_dim = node_features.shape
    assert na == n_agents
    hidden_dim = params["w1"].shape[1]
    del adj_list  # adj_list * (1 - eye) is computed but never used in torch forward

    N = bs * sl * n_agents
    tm = _choose_tile(N, tile_m)
    n_steps = pl.cdiv(N, tm)
    N_pad = n_steps * tm

    x2d = node_features.reshape(N, input_dim).astype(io_dtype)
    eps2d = eps.reshape(N, latent_dim).astype(io_dtype)
    if N_pad != N:
        pad = N_pad - N
        x2d = jnp.pad(x2d, ((0, pad), (0, 0)))
        eps2d = jnp.pad(eps2d, ((0, pad), (0, 0)))

    # fused mu|logvar weights; biases stay f32 (added after f32 accumulation)
    w1 = params["w1"].astype(io_dtype)
    b1 = params["b1"].astype(jnp.float32)
    wml = jnp.concatenate([params["wmu"], params["wlv"]], axis=1).astype(io_dtype)
    bml = jnp.concatenate([params["bmu"], params["blv"]], axis=1).astype(jnp.float32)
    wd1 = params["wd1"].astype(io_dtype)
    bd1 = params["bd1"].astype(jnp.float32)
    wd2 = params["wd2"].astype(io_dtype)
    bd2 = params["bd2"].astype(jnp.float32)

    out_w = input_dim + 3 * latent_dim

    row_spec = lambda d: pl.BlockSpec((tm, d), lambda i: (i, 0))
    full_spec = lambda shape: pl.BlockSpec(shape, lambda i: (0, 0))

    in_specs = [
        row_spec(input_dim),                       # x
        row_spec(latent_dim),                      # eps
        full_spec((input_dim, hidden_dim)),        # w1
        full_spec((1, hidden_dim)),                # b1
        full_spec((hidden_dim, 2 * latent_dim)),   # wmu|wlv fused
        full_spec((1, 2 * latent_dim)),            # bmu|blv fused
        full_spec((latent_dim, hidden_dim)),       # wd1
        full_spec((1, hidden_dim)),                # bd1
        full_spec((hidden_dim, input_dim)),        # wd2
        full_spec((1, input_dim)),                 # bd2
    ]

    out2d = pl.pallas_call(
        functools.partial(_vae_kernel, latent_dim=latent_dim),
        out_shape=jax.ShapeDtypeStruct((N_pad, out_w), jnp.float32),
        grid_spec=pltpu.PrefetchScalarGridSpec(
            num_scalar_prefetch=0,
            grid=(n_steps,),
            in_specs=in_specs,
            out_specs=row_spec(out_w),
        ),
        compiler_params=pltpu.CompilerParams(
            dimension_semantics=("parallel",)),
    )(x2d, eps2d, w1, b1, wml, bml, wd1, bd1, wd2, bd2)

    out2d = out2d[:N]
    recon = out2d[:, :input_dim].reshape(bs, sl, n_agents, input_dim)
    mu_flat = out2d[:, input_dim:input_dim + latent_dim].reshape(bs, sl, n_agents * latent_dim)
    logvar_flat = out2d[:, input_dim + latent_dim:input_dim + 2 * latent_dim
                        ].reshape(bs, sl, n_agents * latent_dim)
    z_flat = out2d[:, input_dim + 2 * latent_dim:].reshape(bs, sl, n_agents * latent_dim)
    return recon, mu_flat, logvar_flat, z_flat


def init_params(key, input_dim, hidden_dim, latent_dim):
    """Deterministic synthetic init mirroring nn.Linear's uniform(-1/sqrt(fan_in))."""
    def linear(key, fan_in, fan_out):
        kw, kb = jax.random.split(key)
        bound = 1.0 / jnp.sqrt(fan_in)
        w = jax.random.uniform(kw, (fan_in, fan_out), jnp.float32, -bound, bound)
        b = jax.random.uniform(kb, (1, fan_out), jnp.float32, -bound, bound)
        return w, b

    k1, k2, k3, k4, k5 = jax.random.split(key, 5)
    w1, b1 = linear(k1, input_dim, hidden_dim)      # encoder_weight_1
    wlv, blv = linear(k2, hidden_dim, latent_dim)   # weight_logvar
    wmu, bmu = linear(k3, hidden_dim, latent_dim)   # weight_mu
    wd1, bd1 = linear(k4, latent_dim, hidden_dim)   # decoder_weight_1
    wd2, bd2 = linear(k5, hidden_dim, input_dim)    # decoder_weight_2
    return dict(w1=w1, b1=b1, wmu=wmu, bmu=bmu, wlv=wlv, blv=blv,
                wd1=wd1, bd1=bd1, wd2=wd2, bd2=bd2)


if __name__ == "__main__":
    # small config consistent with the module's args
    bs, sl, n_agents = 2, 8, 4
    input_dim = 32     # args.rnn_hidden_dim
    hidden_dim = 64    # args.hidden_dim
    latent_dim = 16    # args.latent_dim

    key = jax.random.PRNGKey(0)
    k_x, k_adj, k_eps, k_par = jax.random.split(key, 4)

    node_features = jax.random.normal(k_x, (bs, sl, n_agents, input_dim), jnp.float32)
    adj_list = (jax.random.uniform(k_adj, (bs, sl, n_agents, n_agents)) > 0.5).astype(jnp.float32)
    eps = jax.random.normal(k_eps, (bs, sl, n_agents, latent_dim), jnp.float32)
    params = init_params(k_par, input_dim, hidden_dim, latent_dim)

    fwd = functools.partial(flatten_state_autoencoder_forward,
                            n_agents=n_agents, latent_dim=latent_dim)

    # -------- f32 path (bit-matches the reference) --------
    recon, mu_flat, logvar_flat, z_flat = fwd(node_features, adj_list, eps, params)
    jax.block_until_ready((recon, mu_flat, logvar_flat, z_flat))

    # reference check in plain JAX
    x2d = node_features.reshape(-1, input_dim)
    h1 = jnp.maximum(x2d @ params["w1"] + params["b1"], 0.0)
    mu_r = h1 @ params["wmu"] + params["bmu"]
    lv_r = h1 @ params["wlv"] + params["blv"]
    z_r = mu_r + eps.reshape(-1, latent_dim) * jnp.exp(0.5 * lv_r)
    d1 = jnp.maximum(z_r @ params["wd1"] + params["bd1"], 0.0)
    recon_r = (d1 @ params["wd2"] + params["bd2"]).reshape(bs, sl, n_agents, input_dim)

    assert recon.shape == (bs, sl, n_agents, input_dim)
    assert mu_flat.shape == (bs, sl, n_agents * latent_dim)
    assert logvar_flat.shape == (bs, sl, n_agents * latent_dim)
    assert z_flat.shape == (bs, sl, n_agents * latent_dim)
    assert jnp.allclose(recon, recon_r, atol=1e-5, rtol=1e-5)
    assert jnp.allclose(mu_flat.reshape(-1, latent_dim), mu_r, atol=1e-5, rtol=1e-5)
    assert jnp.allclose(logvar_flat.reshape(-1, latent_dim), lv_r, atol=1e-5, rtol=1e-5)
    assert jnp.allclose(z_flat.reshape(-1, latent_dim), z_r, atol=1e-5, rtol=1e-5)

    # -------- bf16 I/O path (mem-bound optimization for v6e/v7x): must run & be finite --------
    recon_b, mu_b, lv_b, z_b = fwd(node_features, adj_list, eps, params,
                                   io_dtype=jnp.bfloat16)
    jax.block_until_ready((recon_b, mu_b, lv_b, z_b))
    assert recon_b.shape == recon.shape
    assert bool(jnp.all(jnp.isfinite(recon_b))) and bool(jnp.all(jnp.isfinite(z_b)))

    print("KERNEL_OK")
</pallas_src>

<mosaic_0001>
module attributes {stable_mosaic.version = 11 : i64} {
  func.func @_vae_kernel(%arg0: i32, %arg1: memref<32x32xf32, #tpu.memory_space<vmem>>, %arg2: memref<32x16xf32, #tpu.memory_space<vmem>>, %arg3: memref<32x64xf32, #tpu.memory_space<vmem>>, %arg4: memref<1x64xf32, #tpu.memory_space<vmem>>, %arg5: memref<64x32xf32, #tpu.memory_space<vmem>>, %arg6: memref<1x32xf32, #tpu.memory_space<vmem>>, %arg7: memref<16x64xf32, #tpu.memory_space<vmem>>, %arg8: memref<1x64xf32, #tpu.memory_space<vmem>>, %arg9: memref<64x32xf32, #tpu.memory_space<vmem>>, %arg10: memref<1x32xf32, #tpu.memory_space<vmem>>, %arg11: memref<32x80xf32, #tpu.memory_space<vmem>>) attributes {dimension_semantics = [#tpu.dimension_semantics<parallel>], iteration_bounds = array<i64: 2>, scalar_prefetch = 0 : i64, scratch_operands = 0 : i64, tpu.core_type = #tpu.core_type<tc>, window_params = [{transform_indices = @transform_0, window_bounds = array<i64: 32, 32>}, {transform_indices = @transform_1, window_bounds = array<i64: 32, 16>}, {pipeline_mode = #tpu.pipeline_mode<synchronous>, transform_indices = @transform_2, window_bounds = array<i64: 32, 64>}, {pipeline_mode = #tpu.pipeline_mode<synchronous>, transform_indices = @transform_3, window_bounds = array<i64: 1, 64>}, {pipeline_mode = #tpu.pipeline_mode<synchronous>, transform_indices = @transform_4, window_bounds = array<i64: 64, 32>}, {pipeline_mode = #tpu.pipeline_mode<synchronous>, transform_indices = @transform_5, window_bounds = array<i64: 1, 32>}, {pipeline_mode = #tpu.pipeline_mode<synchronous>, transform_indices = @transform_6, window_bounds = array<i64: 16, 64>}, {pipeline_mode = #tpu.pipeline_mode<synchronous>, transform_indices = @transform_7, window_bounds = array<i64: 1, 64>}, {pipeline_mode = #tpu.pipeline_mode<synchronous>, transform_indices = @transform_8, window_bounds = array<i64: 64, 32>}, {pipeline_mode = #tpu.pipeline_mode<synchronous>, transform_indices = @transform_9, window_bounds = array<i64: 1, 32>}, {transform_indices = @transform_10, window_bounds = array<i64: 32, 80>}]} {
    %c0 = arith.constant 0 : index
    %c0_0 = arith.constant 0 : index
    %0 = vector.load %arg1[%c0, %c0_0] : memref<32x32xf32, #tpu.memory_space<vmem>>, vector<32x32xf32>
    %c0_1 = arith.constant 0 : index
    %c0_2 = arith.constant 0 : index
    %1 = vector.load %arg3[%c0_1, %c0_2] : memref<32x64xf32, #tpu.memory_space<vmem>>, vector<32x64xf32>
    %cst = arith.constant dense<0.000000e+00> : vector<32x64xf32>
    %2 = tpu.matmul %0, %1, %cst {dimension_numbers = #tpu.dot_dimension_numbers<[1], [0], [0], [1], [0, 0, 1, 1], [], []>} : vector<32x32xf32>, vector<32x64xf32>, vector<32x64xf32> -> vector<32x64xf32>
    %c0_3 = arith.constant 0 : index
    %c0_4 = arith.constant 0 : index
    %3 = vector.load %arg4[%c0_3, %c0_4] : memref<1x64xf32, #tpu.memory_space<vmem>>, vector<1x64xf32>
    %4 = vector.broadcast %3 : vector<1x64xf32> to vector<32x64xf32>
    %5 = arith.addf %2, %4 : vector<32x64xf32>
    %cst_5 = arith.constant 0.000000e+00 : f32
    %6 = vector.broadcast %cst_5 : f32 to vector<32x64xf32>
    %7 = arith.maximumf %5, %6 : vector<32x64xf32>
    %c0_6 = arith.constant 0 : index
    %c0_7 = arith.constant 0 : index
    %8 = vector.load %arg5[%c0_6, %c0_7] : memref<64x32xf32, #tpu.memory_space<vmem>>, vector<64x32xf32>
    %cst_8 = arith.constant dense<0.000000e+00> : vector<32x32xf32>
    %9 = tpu.matmul %7, %8, %cst_8 {dimension_numbers = #tpu.dot_dimension_numbers<[1], [0], [0], [1], [0, 0, 1, 1], [], []>} : vector<32x64xf32>, vector<64x32xf32>, vector<32x32xf32> -> vector<32x32xf32>
    %c0_9 = arith.constant 0 : index
    %c0_10 = arith.constant 0 : index
    %10 = vector.load %arg6[%c0_9, %c0_10] : memref<1x32xf32, #tpu.memory_space<vmem>>, vector<1x32xf32>
    %11 = vector.broadcast %10 : vector<1x32xf32> to vector<32x32xf32>
    %12 = arith.addf %9, %11 : vector<32x32xf32>
    %13 = vector.extract_strided_slice %12 {offsets = [0, 0], sizes = [32, 16], strides = [1, 1]} : vector<32x32xf32> to vector<32x16xf32>
    %14 = vector.extract_strided_slice %12 {offsets = [0, 16], sizes = [32, 16], strides = [1, 1]} : vector<32x32xf32> to vector<32x16xf32>
    %c0_11 = arith.constant 0 : index
    %c0_12 = arith.constant 0 : index
    %15 = vector.load %arg2[%c0_11, %c0_12] : memref<32x16xf32, #tpu.memory_space<vmem>>, vector<32x16xf32>
    %cst_13 = arith.constant 5.000000e-01 : f32
    %16 = vector.broadcast %cst_13 : f32 to vector<32x16xf32>
    %17 = arith.mulf %16, %14 : vector<32x16xf32>
    %18 = math.exp %17 : vector<32x16xf32>
    %19 = arith.mulf %15, %18 : vector<32x16xf32>
    %20 = arith.addf %13, %19 : vector<32x16xf32>
    %c0_14 = arith.constant 0 : index
    %c0_15 = arith.constant 0 : index
    %21 = vector.load %arg7[%c0_14, %c0_15] : memref<16x64xf32, #tpu.memory_space<vmem>>, vector<16x64xf32>
    %cst_16 = arith.constant dense<0.000000e+00> : vector<32x64xf32>
    %22 = tpu.matmul %20, %21, %cst_16 {dimension_numbers = #tpu.dot_dimension_numbers<[1], [0], [0], [1], [0, 0, 1, 1], [], []>} : vector<32x16xf32>, vector<16x64xf32>, vector<32x64xf32> -> vector<32x64xf32>
    %c0_17 = arith.constant 0 : index
    %c0_18 = arith.constant 0 : index
    %23 = vector.load %arg8[%c0_17, %c0_18] : memref<1x64xf32, #tpu.memory_space<vmem>>, vector<1x64xf32>
    %24 = vector.broadcast %23 : vector<1x64xf32> to vector<32x64xf32>
    %25 = arith.addf %22, %24 : vector<32x64xf32>
    %cst_19 = arith.constant 0.000000e+00 : f32
    %26 = vector.broadcast %cst_19 : f32 to vector<32x64xf32>
    %27 = arith.maximumf %25, %26 : vector<32x64xf32>
    %c0_20 = arith.constant 0 : index
    %c0_21 = arith.constant 0 : index
    %28 = vector.load %arg9[%c0_20, %c0_21] : memref<64x32xf32, #tpu.memory_space<vmem>>, vector<64x32xf32>
    %cst_22 = arith.constant dense<0.000000e+00> : vector<32x32xf32>
    %29 = tpu.matmul %27, %28, %cst_22 {dimension_numbers = #tpu.dot_dimension_numbers<[1], [0], [0], [1], [0, 0, 1, 1], [], []>} : vector<32x64xf32>, vector<64x32xf32>, vector<32x32xf32> -> vector<32x32xf32>
    %c0_23 = arith.constant 0 : index
    %c0_24 = arith.constant 0 : index
    %30 = vector.load %arg10[%c0_23, %c0_24] : memref<1x32xf32, #tpu.memory_space<vmem>>, vector<1x32xf32>
    %31 = vector.broadcast %30 : vector<1x32xf32> to vector<32x32xf32>
    %32 = arith.addf %29, %31 : vector<32x32xf32>
    %33 = tpu.concatenate %32, %13, %14, %20 in 1 : vector<32x32xf32>, vector<32x16xf32>, vector<32x16xf32>, vector<32x16xf32> -> vector<32x80xf32>
    %c0_25 = arith.constant 0 : index
    %c0_26 = arith.constant 0 : index
    %34 = vector.load %arg11[%c0_25, %c0_26] : memref<32x80xf32, #tpu.memory_space<vmem>>, vector<32x80xf32>
    tpu.vector_store %arg11[%c0_25, %c0_26], %33 {strides = array<i32>} : memref<32x80xf32, #tpu.memory_space<vmem>>, vector<32x80xf32>,
    return
  }
  func.func @transform_0(%arg0: i32) -> (i32, i32) {
    %c0_i32 = arith.constant 0 : i32
    %c0_i32_0 = arith.constant 0 : i32
    return %arg0, %c0_i32 : i32, i32
  }
  func.func @transform_1(%arg0: i32) -> (i32, i32) {
    %c0_i32 = arith.constant 0 : i32
    %c0_i32_0 = arith.constant 0 : i32
    return %arg0, %c0_i32 : i32, i32
  }
  func.func @transform_2(%arg0: i32) -> (i32, i32) {
    %c0_i32 = arith.constant 0 : i32
    %c0_i32_0 = arith.constant 0 : i32
    %c0_i32_1 = arith.constant 0 : i32
    return %c0_i32, %c0_i32_0 : i32, i32
  }
  func.func @transform_3(%arg0: i32) -> (i32, i32) {
    %c0_i32 = arith.constant 0 : i32
    %c0_i32_0 = arith.constant 0 : i32
    %c0_i32_1 = arith.constant 0 : i32
    return %c0_i32, %c0_i32_0 : i32, i32
  }
  func.func @transform_4(%arg0: i32) -> (i32, i32) {
    %c0_i32 = arith.constant 0 : i32
    %c0_i32_0 = arith.constant 0 : i32
    %c0_i32_1 = arith.constant 0 : i32
    return %c0_i32, %c0_i32_0 : i32, i32
  }
  func.func @transform_5(%arg0: i32) -> (i32, i32) {
    %c0_i32 = arith.constant 0 : i32
    %c0_i32_0 = arith.constant 0 : i32
    %c0_i32_1 = arith.constant 0 : i32
    return %c0_i32, %c0_i32_0 : i32, i32
  }
  func.func @transform_6(%arg0: i32) -> (i32, i32) {
    %c0_i32 = arith.constant 0 : i32
    %c0_i32_0 = arith.constant 0 : i32
    %c0_i32_1 = arith.constant 0 : i32
    return %c0_i32, %c0_i32_0 : i32, i32
  }
  func.func @transform_7(%arg0: i32) -> (i32, i32) {
    %c0_i32 = arith.constant 0 : i32
    %c0_i32_0 = arith.constant 0 : i32
    %c0_i32_1 = arith.constant 0 : i32
    return %c0_i32, %c0_i32_0 : i32, i32
  }
  func.func @transform_8(%arg0: i32) -> (i32, i32) {
    %c0_i32 = arith.constant 0 : i32
    %c0_i32_0 = arith.constant 0 : i32
    %c0_i32_1 = arith.constant 0 : i32
    return %c0_i32, %c0_i32_0 : i32, i32
  }
  func.func @transform_9(%arg0: i32) -> (i32, i32) {
    %c0_i32 = arith.constant 0 : i32
    %c0_i32_0 = arith.constant 0 : i32
    %c0_i32_1 = arith.constant 0 : i32
    return %c0_i32, %c0_i32_0 : i32, i32
  }
  func.func @transform_10(%arg0: i32) -> (i32, i32) {
    %c0_i32 = arith.constant 0 : i32
    %c0_i32_0 = arith.constant 0 : i32
    return %arg0, %c0_i32 : i32, i32
  }
}

</mosaic_0001>

<llo_original>
// kernel: tpu_custom_call.1
$region0: #{tpu_custom_call.1}
  #allocation0 [shape = 'u32[]', space=smem, size = 0x4, offset = 0x4, fixed_abs, tag = 'smem constant byte address 0x4 - core index']
  #allocation1 [shape = 'u32[144,128]{1,0:T(1,128)}', space=vmem, size = 0x12000, scoped, tag = 'internal scratch']
  %s0 = inlined_call_operand.vmem [shape: f32[64,32], index: 0, kind: input, shape index: {}]
  %s1 = inlined_call_operand.vmem [shape: f32[64,16], index: 1, kind: input, shape index: {}]
  %s2 = inlined_call_operand.vmem [shape: f32[32,64], index: 2, kind: input, shape index: {}]
  %s3 = inlined_call_operand.vmem [shape: f32[1,64], index: 3, kind: input, shape index: {}]
  %s4 = inlined_call_operand.vmem [shape: f32[64,32], index: 4, kind: input, shape index: {}]
  %s5 = inlined_call_operand.vmem [shape: f32[1,32], index: 5, kind: input, shape index: {}]
  %s6 = inlined_call_operand.vmem [shape: f32[16,64], index: 6, kind: input, shape index: {}]
  %s7 = inlined_call_operand.vmem [shape: f32[1,64], index: 7, kind: input, shape index: {}]
  %s8 = inlined_call_operand.vmem [shape: f32[64,32], index: 8, kind: input, shape index: {}]
  %s9 = inlined_call_operand.vmem [shape: f32[1,32], index: 9, kind: input, shape index: {}]
  %s10 = inlined_call_operand.hbm [shape: f32[64,80], index: 10, kind: output, shape index: {}]
  %s11 = sld [smem:[#allocation0]]
  $region73: #{tpu_custom_call.1} parent=0
    _
  %s13 = ssub.s32 1, %s11
  %s14 = scalar_select 0, %s13, %s11
  $region1: #{tpu_custom_call.1} parent=0
    #allocation2 [shape = 'u8[32768]{0}', space=vmem, size = 0x8000, scoped, tag = 'output window, operand 0']
    #allocation3 [shape = 's32[2]{0}', space=sflag, size = 0x8, scoped, tag = 'scoped memory for tpu_custom_call.1']
    %15 = vsyncpa [#allocation3], 0
    %s16 = scalar_lea.sflag [#allocation3], 1
    %17 = vsyncpa %s16, 0
    loop: start=0, step=1, limit=4
    $region2: #{tpu_custom_call.1} parent=1 // loop_pre_header
      _
    $region3: #{tpu_custom_call.1} parent=1 // loop_header
      %s19 = sphi 0, %s23
      %p20 = scmp.ge.s32.totalorder %s19, 4
      %s29 = sphi 0, %s31
      %s32 = sphi 0, %s29
      %s33 = sphi 0, %s32
      %s49 = sphi 0, %s33
      %s55 = sphi 0, %s57
      %s58 = sphi 0, %s55
      %s59 = sphi 0, %s58
      %s75 = sphi 0, %s59
      %s79 = sphi 0, %s79
      %s81 = sphi 0, %s79
      %s82 = sphi 0, %s81
      %s96 = sphi 0, %s82
      %s100 = sphi 0, %s100
      %s102 = sphi 0, %s100
      %s103 = sphi 0, %s102
      %s117 = sphi 0, %s103
      %s121 = sphi 0, %s121
      %s123 = sphi 0, %s121
      %s124 = sphi 0, %s123
      %s138 = sphi 0, %s124
      %s142 = sphi 0, %s142
      %s144 = sphi 0, %s142
      %s145 = sphi 0, %s144
      %s159 = sphi 0, %s145
      %s163 = sphi 0, %s163
      %s165 = sphi 0, %s163
      %s166 = sphi 0, %s165
      %s180 = sphi 0, %s166
      %s184 = sphi 0, %s184
      %s186 = sphi 0, %s184
      %s187 = sphi 0, %s186
      %s201 = sphi 0, %s187
      %s205 = sphi 0, %s205
      %s207 = sphi 0, %s205
      %s208 = sphi 0, %s207
      %s222 = sphi 0, %s208
      %s226 = sphi 0, %s226
      %s228 = sphi 0, %s226
      %s229 = sphi 0, %s228
      %s243 = sphi 0, %s229
      %s249 = sphi 0, %s251
      %s252 = sphi 0, %s249
      %s253 = sphi 0, %s252
      %s269 = sphi 0, %s253
    $region4: #{tpu_custom_call.1} parent=1 // loop_header_branch
      %22 = sbr.rel (%p20) target = $region8
    $region5: #{tpu_custom_call.1} parent=1 // loop_body
      %s24 = ssub.s32 %s19, 1
      %s25 = ssub.s32 %s19, 2
      %s26 = sadd.s32 %s19, 1
      %s27 = ssub.s32 %s19, %s26
      %p28 = scmp.eq.s32.totalorder %s27, 0
      %s30 = sadd.s32 %s29, 1
      %s31 = scalar_select %p28, %s29, %s30
      %p34 = pneg %p28
      %p35 = scmp.eq.s32.totalorder %s19, 1
      %p36 = por %p34, %p35
      %p37 = scmp.ne.s32.totalorder %s29, %s32
      %p38 = scmp.eq.s32.totalorder %s19, 0
      %p39 = por %p37, %p38
      %p40 = scmp.ne.s32.totalorder %s29, %s32
      %p41 = scmp.eq.s32.totalorder %s24, 1
      %p42 = por %p40, %p41
      %p43 = scmp.ne.s32.totalorder %s32, %s33
      %p44 = scmp.eq.s32.totalorder %s24, 0
      %p45 = por %p43, %p44
      %p46 = scmp.ne.s32.totalorder %s32, %s33
      %p47 = scmp.eq.s32.totalorder %s25, 1
      %p48 = por %p46, %p47
      %p50 = scmp.ne.s32.totalorder %s33, %s49
      %p51 = scmp.eq.s32.totalorder %s25, 0
      %p52 = por %p50, %p51
      %s53 = ssub.s32 %s19, %s26
      %p54 = scmp.eq.s32.totalorder %s53, 0
      %s56 = sadd.s32 %s55, 1
      %s57 = scalar_select %p54, %s55, %s56
      %p60 = pneg %p54
      %p61 = scmp.eq.s32.totalorder %s19, 1
      %p62 = por %p60, %p61
      %p63 = scmp.ne.s32.totalorder %s55, %s58
      %p64 = scmp.eq.s32.totalorder %s19, 0
      %p65 = por %p63, %p64
      %p66 = scmp.ne.s32.totalorder %s55, %s58
      %p67 = scmp.eq.s32.totalorder %s24, 1
      %p68 = por %p66, %p67
      %p69 = scmp.ne.s32.totalorder %s58, %s59
      %p70 = scmp.eq.s32.totalorder %s24, 0
      %p71 = por %p69, %p70
      %p72 = scmp.ne.s32.totalorder %s58, %s59
      %p73 = scmp.eq.s32.totalorder %s25, 1
      %p74 = por %p72, %p73
      %p76 = scmp.ne.s32.totalorder %s59, %s75
      %p77 = scmp.eq.s32.totalorder %s25, 0
      %p78 = por %p76, %p77
      %s80 = sadd.s32 %s79, 1
      %p83 = scmp.eq.s32.totalorder %s19, 1
      %p84 = scmp.ne.s32.totalorder %s79, %s81
      %p85 = scmp.eq.s32.totalorder %s19, 0
      %p86 = por %p84, %p85
      %p87 = scmp.ne.s32.totalorder %s79, %s81
      %p88 = scmp.eq.s32.totalorder %s24, 1
      %p89 = por %p87, %p88
      %p90 = scmp.ne.s32.totalorder %s81, %s82
      %p91 = scmp.eq.s32.totalorder %s24, 0
      %p92 = por %p90, %p91
      %p93 = scmp.ne.s32.totalorder %s81, %s82
      %p94 = scmp.eq.s32.totalorder %s25, 1
      %p95 = por %p93, %p94
      %p97 = scmp.ne.s32.totalorder %s82, %s96
      %p98 = scmp.eq.s32.totalorder %s25, 0
      %p99 = por %p97, %p98
      %s101 = sadd.s32 %s100, 1
      %p104 = scmp.eq.s32.totalorder %s19, 1
      %p105 = scmp.ne.s32.totalorder %s100, %s102
      %p106 = scmp.eq.s32.totalorder %s19, 0
      %p107 = por %p105, %p106
      %p108 = scmp.ne.s32.totalorder %s100, %s102
      %p109 = scmp.eq.s32.totalorder %s24, 1
      %p110 = por %p108, %p109
      %p111 = scmp.ne.s32.totalorder %s102, %s103
      %p112 = scmp.eq.s32.totalorder %s24, 0
      %p113 = por %p111, %p112
      %p114 = scmp.ne.s32.totalorder %s102, %s103
      %p115 = scmp.eq.s32.totalorder %s25, 1
      %p116 = por %p114, %p115
      %p118 = scmp.ne.s32.totalorder %s103, %s117
      %p119 = scmp.eq.s32.totalorder %s25, 0
      %p120 = por %p118, %p119
      %s122 = sadd.s32 %s121, 1
      %p125 = scmp.eq.s32.totalorder %s19, 1
      %p126 = scmp.ne.s32.totalorder %s121, %s123
      %p127 = scmp.eq.s32.totalorder %s19, 0
      %p128 = por %p126, %p127
      %p129 = scmp.ne.s32.totalorder %s121, %s123
      %p130 = scmp.eq.s32.totalorder %s24, 1
      %p131 = por %p129, %p130
      %p132 = scmp.ne.s32.totalorder %s123, %s124
      %p133 = scmp.eq.s32.totalorder %s24, 0
      %p134 = por %p132, %p133
      %p135 = scmp.ne.s32.totalorder %s123, %s124
      %p136 = scmp.eq.s32.totalorder %s25, 1
      %p137 = por %p135, %p136
      %p139 = scmp.ne.s32.totalorder %s124, %s138
      %p140 = scmp.eq.s32.totalorder %s25, 0
      %p141 = por %p139, %p140
      %s143 = sadd.s32 %s142, 1
      %p146 = scmp.eq.s32.totalorder %s19, 1
      %p147 = scmp.ne.s32.totalorder %s142, %s144
      %p148 = scmp.eq.s32.totalorder %s19, 0
      %p149 = por %p147, %p148
      %p150 = scmp.ne.s32.totalorder %s142, %s144
      %p151 = scmp.eq.s32.totalorder %s24, 1
      %p152 = por %p150, %p151
      %p153 = scmp.ne.s32.totalorder %s144, %s145
      %p154 = scmp.eq.s32.totalorder %s24, 0
      %p155 = por %p153, %p154
      %p156 = scmp.ne.s32.totalorder %s144, %s145
      %p157 = scmp.eq.s32.totalorder %s25, 1
      %p158 = por %p156, %p157
      %p160 = scmp.ne.s32.totalorder %s145, %s159
      %p161 = scmp.eq.s32.totalorder %s25, 0
      %p162 = por %p160, %p161
      %s164 = sadd.s32 %s163, 1
      %p167 = scmp.eq.s32.totalorder %s19, 1
      %p168 = scmp.ne.s32.totalorder %s163, %s165
      %p169 = scmp.eq.s32.totalorder %s19, 0
      %p170 = por %p168, %p169
      %p171 = scmp.ne.s32.totalorder %s163, %s165
      %p172 = scmp.eq.s32.totalorder %s24, 1
      %p173 = por %p171, %p172
      %p174 = scmp.ne.s32.totalorder %s165, %s166
      %p175 = scmp.eq.s32.totalorder %s24, 0
      %p176 = por %p174, %p175
      %p177 = scmp.ne.s32.totalorder %s165, %s166
      %p178 = scmp.eq.s32.totalorder %s25, 1
      %p179 = por %p177, %p178
      %p181 = scmp.ne.s32.totalorder %s166, %s180
      %p182 = scmp.eq.s32.totalorder %s25, 0
      %p183 = por %p181, %p182
      %s185 = sadd.s32 %s184, 1
      %p188 = scmp.eq.s32.totalorder %s19, 1
      %p189 = scmp.ne.s32.totalorder %s184, %s186
      %p190 = scmp.eq.s32.totalorder %s19, 0
      %p191 = por %p189, %p190
      %p192 = scmp.ne.s32.totalorder %s184, %s186
      %p193 = scmp.eq.s32.totalorder %s24, 1
      %p194 = por %p192, %p193
      %p195 = scmp.ne.s32.totalorder %s186, %s187
      %p196 = scmp.eq.s32.totalorder %s24, 0
      %p197 = por %p195, %p196
      %p198 = scmp.ne.s32.totalorder %s186, %s187
      %p199 = scmp.eq.s32.totalorder %s25, 1
      %p200 = por %p198, %p199
      %p202 = scmp.ne.s32.totalorder %s187, %s201
      %p203 = scmp.eq.s32.totalorder %s25, 0
      %p204 = por %p202, %p203
      %s206 = sadd.s32 %s205, 1
      %p209 = scmp.eq.s32.totalorder %s19, 1
      %p210 = scmp.ne.s32.totalorder %s205, %s207
      %p211 = scmp.eq.s32.totalorder %s19, 0
      %p212 = por %p210, %p211
      %p213 = scmp.ne.s32.totalorder %s205, %s207
      %p214 = scmp.eq.s32.totalorder %s24, 1
      %p215 = por %p213, %p214
      %p216 = scmp.ne.s32.totalorder %s207, %s208
      %p217 = scmp.eq.s32.totalorder %s24, 0
      %p218 = por %p216, %p217
      %p219 = scmp.ne.s32.totalorder %s207, %s208
      %p220 = scmp.eq.s32.totalorder %s25, 1
      %p221 = por %p219, %p220
      %p223 = scmp.ne.s32.totalorder %s208, %s222
      %p224 = scmp.eq.s32.totalorder %s25, 0
      %p225 = por %p223, %p224
      %s227 = sadd.s32 %s226, 1
      %p230 = scmp.eq.s32.totalorder %s19, 1
      %p231 = scmp.ne.s32.totalorder %s226, %s228
      %p232 = scmp.eq.s32.totalorder %s19, 0
      %p233 = por %p231, %p232
      %p234 = scmp.ne.s32.totalorder %s226, %s228
      %p235 = scmp.eq.s32.totalorder %s24, 1
      %p236 = por %p234, %p235
      %p237 = scmp.ne.s32.totalorder %s228, %s229
      %p238 = scmp.eq.s32.totalorder %s24, 0
      %p239 = por %p237, %p238
      %p240 = scmp.ne.s32.totalorder %s228, %s229
      %p241 = scmp.eq.s32.totalorder %s25, 1
      %p242 = por %p240, %p241
      %p244 = scmp.ne.s32.totalorder %s229, %s243
      %p245 = scmp.eq.s32.totalorder %s25, 0
      %p246 = por %p244, %p245
      %s247 = ssub.s32 %s19, %s26
      %p248 = scmp.eq.s32.totalorder %s247, 0
      %s250 = sadd.s32 %s249, 1
      %s251 = scalar_select %p248, %s249, %s250
      %p254 = pneg %p248
      %p255 = scmp.eq.s32.totalorder %s19, 1
      %p256 = por %p254, %p255
      %p257 = scmp.ne.s32.totalorder %s249, %s252
      %p258 = scmp.eq.s32.totalorder %s19, 0
      %p259 = por %p257, %p258
      %p260 = scmp.ne.s32.totalorder %s249, %s252
      %p261 = scmp.eq.s32.totalorder %s24, 1
      %p262 = por %p260, %p261
      %p263 = scmp.ne.s32.totalorder %s252, %s253
      %p264 = scmp.eq.s32.totalorder %s24, 0
      %p265 = por %p263, %p264
      %p266 = scmp.ne.s32.totalorder %s252, %s253
      %p267 = scmp.eq.s32.totalorder %s25, 1
      %p268 = por %p266, %p267
      %p270 = scmp.ne.s32.totalorder %s253, %s269
      %p271 = scmp.eq.s32.totalorder %s25, 0
      %p272 = por %p270, %p271
      %p273 = scmp.le.s32.totalorder 1, %s19
      %p274 = scmp.lt.s32.totalorder %s19, 3
      %p275 = pnand %p273, %p274
      %p276 = pneg %p275
      // Predicated region
      $region9: #{tpu_custom_call.1} parent=5 // pred_check
        _
      $region10: #{tpu_custom_call.1} parent=5 // pred_check_branch
        %278 = sbr.rel (%p275) target = $region12
      $region11: #{tpu_custom_call.1} parent=5 // pred_region
        %s279 = ssub.s32 %s19, 1
        // Predicated region
        $region13: #{tpu_custom_call.1} parent=11 // pred_check
          %p280 = pneg %p92
        $region14: #{tpu_custom_call.1} parent=11 // pred_check_branch
          %282 = sbr.rel (%p280) target = $region16
        $region15: #{tpu_custom_call.1} parent=11 // pred_region
          _
        $region16: #{tpu_custom_call.1} parent=11 // pred_fallthru
          _
        // Predicated region
        $region17: #{tpu_custom_call.1} parent=11 // pred_check
          %p283 = pneg %p113
        $region18: #{tpu_custom_call.1} parent=11 // pred_check_branch
          %285 = sbr.rel (%p283) target = $region20
        $region19: #{tpu_custom_call.1} parent=11 // pred_region
          _
        $region20: #{tpu_custom_call.1} parent=11 // pred_fallthru
          _
        // Predicated region
        $region21: #{tpu_custom_call.1} parent=11 // pred_check
          %p286 = pneg %p134
        $region22: #{tpu_custom_call.1} parent=11 // pred_check_branch
          %288 = sbr.rel (%p286) target = $region24
        $region23: #{tpu_custom_call.1} parent=11 // pred_region
          _
        $region24: #{tpu_custom_call.1} parent=11 // pred_fallthru
          _
        // Predicated region
        $region25: #{tpu_custom_call.1} parent=11 // pred_check
          %p289 = pneg %p155
        $region26: #{tpu_custom_call.1} parent=11 // pred_check_branch
          %291 = sbr.rel (%p289) target = $region28
        $region27: #{tpu_custom_call.1} parent=11 // pred_region
          _
        $region28: #{tpu_custom_call.1} parent=11 // pred_fallthru
          _
        // Predicated region
        $region29: #{tpu_custom_call.1} parent=11 // pred_check
          %p292 = pneg %p176
        $region30: #{tpu_custom_call.1} parent=11 // pred_check_branch
          %294 = sbr.rel (%p292) target = $region32
        $region31: #{tpu_custom_call.1} parent=11 // pred_region
          _
        $region32: #{tpu_custom_call.1} parent=11 // pred_fallthru
          _
        // Predicated region
        $region33: #{tpu_custom_call.1} parent=11 // pred_check
          %p295 = pneg %p197
        $region34: #{tpu_custom_call.1} parent=11 // pred_check_branch
          %297 = sbr.rel (%p295) target = $region36
        $region35: #{tpu_custom_call.1} parent=11 // pred_region
          _
        $region36: #{tpu_custom_call.1} parent=11 // pred_fallthru
          _
        // Predicated region
        $region37: #{tpu_custom_call.1} parent=11 // pred_check
          %p298 = pneg %p218
        $region38: #{tpu_custom_call.1} parent=11 // pred_check_branch
          %300 = sbr.rel (%p298) target = $region40
        $region39: #{tpu_custom_call.1} parent=11 // pred_region
          _
        $region40: #{tpu_custom_call.1} parent=11 // pred_fallthru
          _
        // Predicated region
        $region41: #{tpu_custom_call.1} parent=11 // pred_check
          %p301 = pneg %p239
        $region42: #{tpu_custom_call.1} parent=11 // pred_check_branch
          %303 = sbr.rel (%p301) target = $region44
        $region43: #{tpu_custom_call.1} parent=11 // pred_region
          _
        $region44: #{tpu_custom_call.1} parent=11 // pred_fallthru
          _
      $region12: #{tpu_custom_call.1} parent=5 // pred_fallthru
        _
      %p304 = scmp.lt.s32.totalorder %s19, 2
      // Predicated region
      $region45: #{tpu_custom_call.1} parent=5 // pred_check
        %p305 = pneg %p304
      $region46: #{tpu_custom_call.1} parent=5 // pred_check_branch
        %307 = sbr.rel (%p305) target = $region48
      $region47: #{tpu_custom_call.1} parent=5 // pred_region
        // Predicated region
        $region49: #{tpu_custom_call.1} parent=47 // pred_check
          %p308 = pneg %p39
        $region50: #{tpu_custom_call.1} parent=47 // pred_check_branch
          %310 = sbr.rel (%p308) target = $region52
        $region51: #{tpu_custom_call.1} parent=47 // pred_region
          %s311 = smul.u32 4, %s19
          %p312 = scmp.lt.s32.totalorder %s311, 7
          %s313 = scalar_select %p312, %s311, 7
          %s314 = smul.addr %s313, 8
          %s315 = scalar_lea.vmem %s0, %s314
          %s316 = smul.u32 4, %s19
        $region52: #{tpu_custom_call.1} parent=47 // pred_fallthru
          _
        // Predicated region
        $region53: #{tpu_custom_call.1} parent=47 // pred_check
          %p317 = pneg %p65
        $region54: #{tpu_custom_call.1} parent=47 // pred_check_branch
          %319 = sbr.rel (%p317) target = $region56
        $region55: #{tpu_custom_call.1} parent=47 // pred_region
          %s320 = smul.u32 4, %s19
          %p321 = scmp.lt.s32.totalorder %s320, 7
          %s322 = scalar_select %p321, %s320, 7
          %s323 = smul.addr %s322, 8
          %s324 = scalar_lea.vmem %s1, %s323
          %s325 = smul.u32 4, %s19
        $region56: #{tpu_custom_call.1} parent=47 // pred_fallthru
          _
      $region48: #{tpu_custom_call.1} parent=5 // pred_fallthru
        _
      %p326 = scmp.le.s32.totalorder 1, %s19
      %p327 = scmp.lt.s32.totalorder %s19, 3
      %p328 = pnand %p326, %p327
      %p329 = pneg %p328
      // Predicated region
      $region57: #{tpu_custom_call.1} parent=5 // pred_check
        _
      $region58: #{tpu_custom_call.1} parent=5 // pred_check_branch
        %331 = sbr.rel (%p328) target = $region60
      $region59: #{tpu_custom_call.1} parent=5 // pred_region
        %s332 = ssub.s32 %s19, 1
        %s333 = smul.u32 4, %s24
        %p334 = scmp.lt.s32.totalorder %s333, 7
        %s335 = scalar_select %p334, %s333, 7
        %s336 = smul.addr %s335, 8
        %s337 = scalar_lea.vmem %s0, %s336
        %p338 = pneg %p45
        %p339 = pneg %p42
        %s340 = smul.u32 4, %s24
        %p341 = scmp.lt.s32.totalorder %s340, 7
        %s342 = scalar_select %p341, %s340, 7
        %s343 = smul.addr %s342, 8
        %s344 = scalar_lea.vmem %s1, %s343
        %p345 = pneg %p71
        %p346 = pneg %p68
        %p347 = pneg %p92
        %p348 = pneg %p89
        %p349 = pneg %p113
        %p350 = pneg %p110
        %p351 = pneg %p134
        %p352 = pneg %p131
        %p353 = pneg %p155
        %p354 = pneg %p152
        %p355 = pneg %p176
        %p356 = pneg %p173
        %p357 = pneg %p197
        %p358 = pneg %p194
        %p359 = pneg %p218
        %p360 = pneg %p215
        %p361 = pneg %p239
        %p362 = pneg %p236
        %p363 = pneg %p265
        %p364 = pneg %p262
        %s365 = sand.u32 %s252, 1
        %s366 = scalar_lea.sflag [#allocation3], %s365
        %s367 = sand.u32 %s252, 1
        %s368 = smul.addr %s367, 32
        %s369 = scalar_lea.vmem [#allocation2], %s368
        %s370 = smul.u32 4, %s24
        %p371 = scmp.lt.s32.totalorder %s370, 7
        %s372 = scalar_select %p371, %s370, 7
        %s373 = smul.addr %s372, 8
        %s374 = scalar_lea.vmem %s0, %s373
        %s375 = smul.u32 4, %s24
        %s376 = smul.u32 4, %s24
        %p377 = scmp.lt.s32.totalorder %s376, 7
        %s378 = scalar_select %p377, %s376, 7
        %s379 = smul.addr %s378, 8
        %s380 = scalar_lea.vmem %s1, %s379
        %s381 = smul.u32 4, %s24
        %s382 = smul.u32 4, %s24
        %v383 = vld [vmem:[%s374] sm:$0xff]
        %v384 = vld [vmem:[%s374 + $0x8] sm:$0xff]
        %v385 = vld [vmem:[%s374 + $0x10] sm:$0xff]
        %v386 = vld [vmem:[%s374 + $0x18] sm:$0xff]
        %v387 = vld [vmem:[%s2] sm:$0xff]
        %v388 = vld [vmem:[%s2 + $0x8] sm:$0xff]
        %v389 = vld [vmem:[%s2 + $0x10] sm:$0xff]
        %v390 = vld [vmem:[%s2 + $0x18] sm:$0xff]
        %v391 = vld [vmem:[%s3] sm:$0x1]
        %v393 = vlaneseq
        %v394 = vshrl.u32 %v393, 7
        %v395 = vsub.s32 0, %v394
        %v396 = vrot.slane %v391, %v395
        %vm398 = vcmask 261120
        %v400 = vsel %vm398, %v383, 0
        %v403 = vsel %vm398, %v384, 0
        %v406 = vsel %vm398, %v385, 0
        %v409 = vsel %vm398, %v386, 0
        %411 = vmatprep.subr.mxu0 0.0
        %412 = vmatpush1.msra.mxu0 0.0
        %413 = vmatprep.subr.mxu0 0.0
        %414 = vmatpush1.msra.mxu0 0.0
        %415 = vmatprep.subr.mxu0 0.0
        %416 = vmatpush1.msra.mxu0 0.0
        %417 = vmatprep.subr.mxu0 0.0
        %418 = vmatpush1.msra.mxu0 0.0
        %419 = vmatprep.subr.mxu0 0.0
        %420 = vmatpush1.msra.mxu0 0.0
        %421 = vmatprep.subr.mxu0 0.0
        %422 = vmatpush1.msra.mxu0 0.0
        %423 = vmatprep.subr.mxu0 0.0
        %424 = vmatpush1.msra.mxu0 0.0
        %425 = vmatprep.subr.mxu0 0.0
        %426 = vmatpush1.msra.mxu0 0.0
        %427 = vmatprep.subr.mxu0 0.0
        %428 = vmatpush1.msra.mxu0 0.0
        %429 = vmatprep.subr.mxu0 0.0
        %430 = vmatpush1.msra.mxu0 0.0
        %431 = vmatprep.subr.mxu0 0.0
        %432 = vmatpush1.msra.mxu0 0.0
        %433 = vmatprep.subr.mxu0 0.0
        %434 = vmatpush1.msra.mxu0 0.0
        %435 = vmatprep.subr.mxu0 0.0
        %436 = vmatpush1.msra.mxu0 %v390
        %437 = vmatprep.subr.mxu0 0.0
        %438 = vmatpush1.msra.mxu0 %v389
        %439 = vmatprep.subr.mxu0 0.0
        %440 = vmatpush1.msra.mxu0 %v388
        %441 = vmatprep.subr.mxu0 0.0
        %442 = vmatpush1.msra.mxu0 %v387
        %443 = vmatprep.subr.mxu0 0.0
        %444 = vmatpush2.msra.mxu0 0.0
        %445 = vmatprep.subr.mxu0 0.0
        %446 = vmatpush2.msra.mxu0 0.0
        %447 = vmatprep.subr.mxu0 0.0
        %448 = vmatpush2.msra.mxu0 0.0
        %449 = vmatprep.subr.mxu0 0.0
        %450 = vmatpush2.msra.mxu0 0.0
        %451 = vmatprep.subr.mxu0 0.0
        %452 = vmatpush2.msra.mxu0 0.0
        %453 = vmatprep.subr.mxu0 0.0
        %454 = vmatpush2.msra.mxu0 0.0
        %455 = vmatprep.subr.mxu0 0.0
        %456 = vmatpush2.msra.mxu0 0.0
        %457 = vmatprep.subr.mxu0 0.0
        %458 = vmatpush2.msra.mxu0 0.0
        %459 = vmatprep.subr.mxu0 0.0
        %460 = vmatpush2.msra.mxu0 0.0
        %461 = vmatprep.subr.mxu0 0.0
        %462 = vmatpush2.msra.mxu0 0.0
        %463 = vmatprep.subr.mxu0 0.0
        %464 = vmatpush2.msra.mxu0 0.0
        %465 = vmatprep.subr.mxu0 0.0
        %466 = vmatpush2.msra.mxu0 0.0
        %467 = vmatprep.subr.mxu0 0.0
        %468 = vmatpush2.msra.mxu0 0.0
        %469 = vmatprep.subr.mxu0 0.0
        %470 = vmatpush2.msra.mxu0 0.0
        %471 = vmatprep.subr.mxu0 0.0
        %472 = vmatpush2.msra.mxu0 0.0
        %473 = vmatprep.subr.mxu0 0.0
        %474 = vmatpush2.msra.mxu0 0.0
        %475 = vmatprep.mubr.f32.mxu0 0.0
        %476 = vmatmul.mubr.f32.gmra.mxu0 %v400
        %v477 = vpop.f32.mrf.mxu0
        %v478 = vadd.f32 %v396, %v477
        %v479 = vpop.f32.mrf.mxu0
        %480 = vmatprep.mubr.f32.mxu0 0.0
        %481 = vmatmul.mubr.f32.gmra.mxu0 %v403
        %v482 = vpop.f32.mrf.mxu0
        %v483 = vadd.f32 %v396, %v482
        %v484 = vpop.f32.mrf.mxu0
        %485 = vmatprep.mubr.f32.mxu0 0.0
        %486 = vmatmul.mubr.f32.gmra.mxu0 %v406
        %v487 = vpop.f32.mrf.mxu0
        %v488 = vadd.f32 %v396, %v487
        %v489 = vpop.f32.mrf.mxu0
        %490 = vmatprep.mubr.f32.mxu0 0.0
        %491 = vmatmul.mubr.f32.gmra.mxu0 %v409
        %v492 = vpop.f32.mrf.mxu0
        %v493 = vadd.f32 %v396, %v492
        %v494 = vpop.f32.mrf.mxu0
        %495 = vdwg.mxu0
        %v496 = vmax.f32 %v478, 0.0
        %v497 = vmax.f32 %v483, 0.0
        %v498 = vmax.f32 %v488, 0.0
        %v499 = vmax.f32 %v493, 0.0
        %v500 = vld [vmem:[%s4] sm:$0xff]
        %v501 = vld [vmem:[%s4 + $0x8] sm:$0xff]
        %v502 = vld [vmem:[%s4 + $0x10] sm:$0xff]
        %v503 = vld [vmem:[%s4 + $0x18] sm:$0xff]
        %v504 = vld [vmem:[%s4 + $0x20] sm:$0xff]
        %v505 = vld [vmem:[%s4 + $0x28] sm:$0xff]
        %v506 = vld [vmem:[%s4 + $0x30] sm:$0xff]
        %v507 = vld [vmem:[%s4 + $0x38] sm:$0xff]
        %v508 = vld [vmem:[%s5] sm:$0x1]
        %v510 = vlaneseq
        %v511 = vshrl.u32 %v510, 7
        %v512 = vsub.s32 0, %v511
        %v513 = vrot.slane %v508, %v512
        %vm515 = vcmask 523264
        %v517 = vsel %vm515, %v496, 0
        %v520 = vsel %vm515, %v497, 0
        %v523 = vsel %vm515, %v498, 0
        %v526 = vsel %vm515, %v499, 0
        %528 = vmatprep.subr.mxu0 0.0
        %529 = vmatpush1.msra.mxu0 0.0
        %530 = vmatprep.subr.mxu0 0.0
        %531 = vmatpush1.msra.mxu0 0.0
        %532 = vmatprep.subr.mxu0 0.0
        %533 = vmatpush1.msra.mxu0 0.0
        %534 = vmatprep.subr.mxu0 0.0
        %535 = vmatpush1.msra.mxu0 0.0
        %536 = vmatprep.subr.mxu0 0.0
        %537 = vmatpush1.msra.mxu0 0.0
        %538 = vmatprep.subr.mxu0 0.0
        %539 = vmatpush1.msra.mxu0 0.0
        %540 = vmatprep.subr.mxu0 0.0
        %541 = vmatpush1.msra.mxu0 0.0
        %542 = vmatprep.subr.mxu0 0.0
        %543 = vmatpush1.msra.mxu0 0.0
        %544 = vmatprep.subr.mxu0 0.0
        %545 = vmatpush1.msra.mxu0 %v507
        %546 = vmatprep.subr.mxu0 0.0
        %547 = vmatpush1.msra.mxu0 %v506
        %548 = vmatprep.subr.mxu0 0.0
        %549 = vmatpush1.msra.mxu0 %v505
        %550 = vmatprep.subr.mxu0 0.0
        %551 = vmatpush1.msra.mxu0 %v504
        %552 = vmatprep.subr.mxu0 0.0
        %553 = vmatpush1.msra.mxu0 %v503
        %554 = vmatprep.subr.mxu0 0.0
        %555 = vmatpush1.msra.mxu0 %v502
        %556 = vmatprep.subr.mxu0 0.0
        %557 = vmatpush1.msra.mxu0 %v501
        %558 = vmatprep.subr.mxu0 0.0
        %559 = vmatpush1.msra.mxu0 %v500
        %560 = vmatprep.subr.mxu0 0.0
        %561 = vmatpush2.msra.mxu0 0.0
        %562 = vmatprep.subr.mxu0 0.0
        %563 = vmatpush2.msra.mxu0 0.0
        %564 = vmatprep.subr.mxu0 0.0
        %565 = vmatpush2.msra.mxu0 0.0
        %566 = vmatprep.subr.mxu0 0.0
        %567 = vmatpush2.msra.mxu0 0.0
        %568 = vmatprep.subr.mxu0 0.0
        %569 = vmatpush2.msra.mxu0 0.0
        %570 = vmatprep.subr.mxu0 0.0
        %571 = vmatpush2.msra.mxu0 0.0
        %572 = vmatprep.subr.mxu0 0.0
        %573 = vmatpush2.msra.mxu0 0.0
        %574 = vmatprep.subr.mxu0 0.0
        %575 = vmatpush2.msra.mxu0 0.0
        %576 = vmatprep.subr.mxu0 0.0
        %577 = vmatpush2.msra.mxu0 0.0
        %578 = vmatprep.subr.mxu0 0.0
        %579 = vmatpush2.msra.mxu0 0.0
        %580 = vmatprep.subr.mxu0 0.0
        %581 = vmatpush2.msra.mxu0 0.0
        %582 = vmatprep.subr.mxu0 0.0
        %583 = vmatpush2.msra.mxu0 0.0
        %584 = vmatprep.subr.mxu0 0.0
        %585 = vmatpush2.msra.mxu0 0.0
        %586 = vmatprep.subr.mxu0 0.0
        %587 = vmatpush2.msra.mxu0 0.0
        %588 = vmatprep.subr.mxu0 0.0
        %589 = vmatpush2.msra.mxu0 0.0
        %590 = vmatprep.subr.mxu0 0.0
        %591 = vmatpush2.msra.mxu0 0.0
        %592 = vmatprep.mubr.f32.mxu0 0.0
        %593 = vmatmul.mubr.f32.gmra.mxu0 %v517
        %v594 = vpop.f32.mrf.mxu0
        %v595 = vadd.f32 %v513, %v594
        %v596 = vpop.f32.mrf.mxu0
        %597 = vmatprep.mubr.f32.mxu0 0.0
        %598 = vmatmul.mubr.f32.gmra.mxu0 %v520
        %v599 = vpop.f32.mrf.mxu0
        %v600 = vadd.f32 %v513, %v599
        %v601 = vpop.f32.mrf.mxu0
        %602 = vmatprep.mubr.f32.mxu0 0.0
        %603 = vmatmul.mubr.f32.gmra.mxu0 %v523
        %v604 = vpop.f32.mrf.mxu0
        %v605 = vadd.f32 %v513, %v604
        %v606 = vpop.f32.mrf.mxu0
        %607 = vmatprep.mubr.f32.mxu0 0.0
        %608 = vmatmul.mubr.f32.gmra.mxu0 %v526
        %v609 = vpop.f32.mrf.mxu0
        %v610 = vadd.f32 %v513, %v609
        %v611 = vpop.f32.mrf.mxu0
        %612 = vdwg.mxu0
        %v613 = vld [vmem:[%s380] sm:$0xff]
        %v614 = vld [vmem:[%s380 + $0x8] sm:$0xff]
        %v615 = vld [vmem:[%s380 + $0x10] sm:$0xff]
        %v616 = vld [vmem:[%s380 + $0x18] sm:$0xff]
        %v617 = vmul.f32 %v595, 0.5
        %v618 = vmul.f32 %v600, 0.5
        %v619 = vmul.f32 %v605, 0.5
        %v620 = vmul.f32 %v610, 0.5
        %v621 = vmul.f32 %v617, 1.442695
        %v622 = vpow.pop %v621
        %v623 = vmul.f32 %v618, 1.442695
        %v624 = vpow.pop %v623
        %v625 = vmul.f32 %v619, 1.442695
        %v626 = vpow.pop %v625
        %v627 = vmul.f32 %v620, 1.442695
        %v628 = vpow.pop %v627
        %633 = vrot.lane.b32.xlu0 %v622, 112
        %v634 = vpop.permute.xlu0 %633
        %635 = vrot.lane.b32.xlu0 %v624, 112
        %v636 = vpop.permute.xlu0 %635
        %637 = vrot.lane.b32.xlu0 %v626, 112
        %v638 = vpop.permute.xlu0 %637
        %639 = vrot.lane.b32.xlu0 %v628, 112
        %v640 = vpop.permute.xlu0 %639
        %v645 = vmul.f32 %v613, %v634
        %v646 = vmul.f32 %v614, %v636
        %v647 = vmul.f32 %v615, %v638
        %v648 = vmul.f32 %v616, %v640
        %v649 = vadd.f32 %v595, %v645
        %v650 = vadd.f32 %v600, %v646
        %v651 = vadd.f32 %v605, %v647
        %v652 = vadd.f32 %v610, %v648
        %v653 = vld [vmem:[%s6] sm:$0xff]
        %v654 = vld [vmem:[%s6 + $0x8] sm:$0xff]
        %v655 = vld [vmem:[%s7] sm:$0x1]
        %v657 = vlaneseq
        %v658 = vshrl.u32 %v657, 7
        %v659 = vsub.s32 0, %v658
        %v660 = vrot.slane %v655, %v659
        %vm662 = vcmask 130048
        %v664 = vsel %vm662, %v649, 0
        %v667 = vsel %vm662, %v650, 0
        %v670 = vsel %vm662, %v651, 0
        %v673 = vsel %vm662, %v652, 0
        %675 = vmatprep.subr.mxu0 0.0
        %676 = vmatpush1.msra.mxu0 0.0
        %677 = vmatprep.subr.mxu0 0.0
        %678 = vmatpush1.msra.mxu0 0.0
        %679 = vmatprep.subr.mxu0 0.0
        %680 = vmatpush1.msra.mxu0 0.0
        %681 = vmatprep.subr.mxu0 0.0
        %682 = vmatpush1.msra.mxu0 0.0
        %683 = vmatprep.subr.mxu0 0.0
        %684 = vmatpush1.msra.mxu0 0.0
        %685 = vmatprep.subr.mxu0 0.0
        %686 = vmatpush1.msra.mxu0 0.0
        %687 = vmatprep.subr.mxu0 0.0
        %688 = vmatpush1.msra.mxu0 0.0
        %689 = vmatprep.subr.mxu0 0.0
        %690 = vmatpush1.msra.mxu0 0.0
        %691 = vmatprep.subr.mxu0 0.0
        %692 = vmatpush1.msra.mxu0 0.0
        %693 = vmatprep.subr.mxu0 0.0
        %694 = vmatpush1.msra.mxu0 0.0
        %695 = vmatprep.subr.mxu0 0.0
        %696 = vmatpush1.msra.mxu0 0.0
        %697 = vmatprep.subr.mxu0 0.0
        %698 = vmatpush1.msra.mxu0 0.0
        %699 = vmatprep.subr.mxu0 0.0
        %700 = vmatpush1.msra.mxu0 0.0
        %701 = vmatprep.subr.mxu0 0.0
        %702 = vmatpush1.msra.mxu0 0.0
        %703 = vmatprep.subr.mxu0 0.0
        %704 = vmatpush1.msra.mxu0 %v654
        %705 = vmatprep.subr.mxu0 0.0
        %706 = vmatpush1.msra.mxu0 %v653
        %707 = vmatprep.subr.mxu0 0.0
        %708 = vmatpush2.msra.mxu0 0.0
        %709 = vmatprep.subr.mxu0 0.0
        %710 = vmatpush2.msra.mxu0 0.0
        %711 = vmatprep.subr.mxu0 0.0
        %712 = vmatpush2.msra.mxu0 0.0
        %713 = vmatprep.subr.mxu0 0.0
        %714 = vmatpush2.msra.mxu0 0.0
        %715 = vmatprep.subr.mxu0 0.0
        %716 = vmatpush2.msra.mxu0 0.0
        %717 = vmatprep.subr.mxu0 0.0
        %718 = vmatpush2.msra.mxu0 0.0
        %719 = vmatprep.subr.mxu0 0.0
        %720 = vmatpush2.msra.mxu0 0.0
        %721 = vmatprep.subr.mxu0 0.0
        %722 = vmatpush2.msra.mxu0 0.0
        %723 = vmatprep.subr.mxu0 0.0
        %724 = vmatpush2.msra.mxu0 0.0
        %725 = vmatprep.subr.mxu0 0.0
        %726 = vmatpush2.msra.mxu0 0.0
        %727 = vmatprep.subr.mxu0 0.0
        %728 = vmatpush2.msra.mxu0 0.0
        %729 = vmatprep.subr.mxu0 0.0
        %730 = vmatpush2.msra.mxu0 0.0
        %731 = vmatprep.subr.mxu0 0.0
        %732 = vmatpush2.msra.mxu0 0.0
        %733 = vmatprep.subr.mxu0 0.0
        %734 = vmatpush2.msra.mxu0 0.0
        %735 = vmatprep.subr.mxu0 0.0
        %736 = vmatpush2.msra.mxu0 0.0
        %737 = vmatprep.subr.mxu0 0.0
        %738 = vmatpush2.msra.mxu0 0.0
        %739 = vmatprep.mubr.f32.mxu0 0.0
        %740 = vmatmul.mubr.f32.gmra.mxu0 %v664
        %v741 = vpop.f32.mrf.mxu0
        %v742 = vadd.f32 %v660, %v741
        %v743 = vpop.f32.mrf.mxu0
        %744 = vmatprep.mubr.f32.mxu0 0.0
        %745 = vmatmul.mubr.f32.gmra.mxu0 %v667
        %v746 = vpop.f32.mrf.mxu0
        %v747 = vadd.f32 %v660, %v746
        %v748 = vpop.f32.mrf.mxu0
        %749 = vmatprep.mubr.f32.mxu0 0.0
        %750 = vmatmul.mubr.f32.gmra.mxu0 %v670
        %v751 = vpop.f32.mrf.mxu0
        %v752 = vadd.f32 %v660, %v751
        %v753 = vpop.f32.mrf.mxu0
        %754 = vmatprep.mubr.f32.mxu0 0.0
        %755 = vmatmul.mubr.f32.gmra.mxu0 %v673
        %v756 = vpop.f32.mrf.mxu0
        %v757 = vadd.f32 %v660, %v756
        %v758 = vpop.f32.mrf.mxu0
        %759 = vdwg.mxu0
        %v760 = vmax.f32 %v742, 0.0
        %v761 = vmax.f32 %v747, 0.0
        %v762 = vmax.f32 %v752, 0.0
        %v763 = vmax.f32 %v757, 0.0
        %v764 = vld [vmem:[%s8] sm:$0xff]
        %v765 = vld [vmem:[%s8 + $0x8] sm:$0xff]
        %v766 = vld [vmem:[%s8 + $0x10] sm:$0xff]
        %v767 = vld [vmem:[%s8 + $0x18] sm:$0xff]
        %v768 = vld [vmem:[%s8 + $0x20] sm:$0xff]
        %v769 = vld [vmem:[%s8 + $0x28] sm:$0xff]
        %v770 = vld [vmem:[%s8 + $0x30] sm:$0xff]
        %v771 = vld [vmem:[%s8 + $0x38] sm:$0xff]
        %v772 = vld [vmem:[%s9] sm:$0x1]
        %v774 = vlaneseq
        %v775 = vshrl.u32 %v774, 7
        %v776 = vsub.s32 0, %v775
        %v777 = vrot.slane %v772, %v776
        %v780 = vsel %vm515, %v760, 0
        %v783 = vsel %vm515, %v761, 0
        %v786 = vsel %vm515, %v762, 0
        %v789 = vsel %vm515, %v763, 0
        %791 = vmatprep.subr.mxu0 0.0
        %792 = vmatpush1.msra.mxu0 0.0
        %793 = vmatprep.subr.mxu0 0.0
        %794 = vmatpush1.msra.mxu0 0.0
        %795 = vmatprep.subr.mxu0 0.0
        %796 = vmatpush1.msra.mxu0 0.0
        %797 = vmatprep.subr.mxu0 0.0
        %798 = vmatpush1.msra.mxu0 0.0
        %799 = vmatprep.subr.mxu0 0.0
        %800 = vmatpush1.msra.mxu0 0.0
        %801 = vmatprep.subr.mxu0 0.0
        %802 = vmatpush1.msra.mxu0 0.0
        %803 = vmatprep.subr.mxu0 0.0
        %804 = vmatpush1.msra.mxu0 0.0
        %805 = vmatprep.subr.mxu0 0.0
        %806 = vmatpush1.msra.mxu0 0.0
        %807 = vmatprep.subr.mxu0 0.0
        %808 = vmatpush1.msra.mxu0 %v771
        %809 = vmatprep.subr.mxu0 0.0
        %810 = vmatpush1.msra.mxu0 %v770
        %811 = vmatprep.subr.mxu0 0.0
        %812 = vmatpush1.msra.mxu0 %v769
        %813 = vmatprep.subr.mxu0 0.0
        %814 = vmatpush1.msra.mxu0 %v768
        %815 = vmatprep.subr.mxu0 0.0
        %816 = vmatpush1.msra.mxu0 %v767
        %817 = vmatprep.subr.mxu0 0.0
        %818 = vmatpush1.msra.mxu0 %v766
        %819 = vmatprep.subr.mxu0 0.0
        %820 = vmatpush1.msra.mxu0 %v765
        %821 = vmatprep.subr.mxu0 0.0
        %822 = vmatpush1.msra.mxu0 %v764
        %823 = vmatprep.subr.mxu0 0.0
        %824 = vmatpush2.msra.mxu0 0.0
        %825 = vmatprep.subr.mxu0 0.0
        %826 = vmatpush2.msra.mxu0 0.0
        %827 = vmatprep.subr.mxu0 0.0
        %828 = vmatpush2.msra.mxu0 0.0
        %829 = vmatprep.subr.mxu0 0.0
        %830 = vmatpush2.msra.mxu0 0.0
        %831 = vmatprep.subr.mxu0 0.0
        %832 = vmatpush2.msra.mxu0 0.0
        %833 = vmatprep.subr.mxu0 0.0
        %834 = vmatpush2.msra.mxu0 0.0
        %835 = vmatprep.subr.mxu0 0.0
        %836 = vmatpush2.msra.mxu0 0.0
        %837 = vmatprep.subr.mxu0 0.0
        %838 = vmatpush2.msra.mxu0 0.0
        %839 = vmatprep.subr.mxu0 0.0
        %840 = vmatpush2.msra.mxu0 0.0
        %841 = vmatprep.subr.mxu0 0.0
        %842 = vmatpush2.msra.mxu0 0.0
        %843 = vmatprep.subr.mxu0 0.0
        %844 = vmatpush2.msra.mxu0 0.0
        %845 = vmatprep.subr.mxu0 0.0
        %846 = vmatpush2.msra.mxu0 0.0
        %847 = vmatprep.subr.mxu0 0.0
        %848 = vmatpush2.msra.mxu0 0.0
        %849 = vmatprep.subr.mxu0 0.0
        %850 = vmatpush2.msra.mxu0 0.0
        %851 = vmatprep.subr.mxu0 0.0
        %852 = vmatpush2.msra.mxu0 0.0
        %853 = vmatprep.subr.mxu0 0.0
        %854 = vmatpush2.msra.mxu0 0.0
        %855 = vmatprep.mubr.f32.mxu0 0.0
        %856 = vmatmul.mubr.f32.gmra.mxu0 %v780
        %v857 = vpop.f32.mrf.mxu0
        %v858 = vadd.f32 %v777, %v857
        %v859 = vpop.f32.mrf.mxu0
        %860 = vmatprep.mubr.f32.mxu0 0.0
        %861 = vmatmul.mubr.f32.gmra.mxu0 %v783
        %v862 = vpop.f32.mrf.mxu0
        %v863 = vadd.f32 %v777, %v862
        %v864 = vpop.f32.mrf.mxu0
        %865 = vmatprep.mubr.f32.mxu0 0.0
        %866 = vmatmul.mubr.f32.gmra.mxu0 %v786
        %v867 = vpop.f32.mrf.mxu0
        %v868 = vadd.f32 %v777, %v867
        %v869 = vpop.f32.mrf.mxu0
        %870 = vmatprep.mubr.f32.mxu0 0.0
        %871 = vmatmul.mubr.f32.gmra.mxu0 %v789
        %v872 = vpop.f32.mrf.mxu0
        %v873 = vadd.f32 %v777, %v872
        %v874 = vpop.f32.mrf.mxu0
        %875 = vdwg.mxu0
        %880 = vrot.lane.b32.xlu0 %v595, 32
        %v881 = vpop.permute.xlu0 %880
        %882 = vrot.lane.b32.xlu0 %v600, 32
        %v883 = vpop.permute.xlu0 %882
        %884 = vrot.lane.b32.xlu0 %v605, 32
        %v885 = vpop.permute.xlu0 %884
        %886 = vrot.lane.b32.xlu0 %v610, 32
        %v887 = vpop.permute.xlu0 %886
        %892 = vrot.lane.b32.xlu0 %v649, 64
        %v893 = vpop.permute.xlu0 %892
        %894 = vrot.lane.b32.xlu0 %v650, 64
        %v895 = vpop.permute.xlu0 %894
        %896 = vrot.lane.b32.xlu0 %v651, 64
        %v897 = vpop.permute.xlu0 %896
        %898 = vrot.lane.b32.xlu0 %v652, 64
        %v899 = vpop.permute.xlu0 %898
        %v904 = vsel %vm398, %v858, %v881
        %v905 = vsel %vm398, %v863, %v883
        %v906 = vsel %vm398, %v868, %v885
        %v907 = vsel %vm398, %v873, %v887
        %vm908 = vcmask 392192
        %v909 = vsel %vm908, %v904, %v881
        %v910 = vsel %vm908, %v905, %v883
        %v911 = vsel %vm908, %v906, %v885
        %v912 = vsel %vm908, %v907, %v887
        %v913 = vsel %vm515, %v909, %v893
        %v914 = vsel %vm515, %v910, %v895
        %v915 = vsel %vm515, %v911, %v897
        %v916 = vsel %vm515, %v912, %v899
        %vm917 = vcmask 654336
        %918 = vst.msk [vmem:[%s369] sm:$0xff] %vm917, %v913
        %919 = vst.msk [vmem:[%s369 + $0x8] sm:$0xff] %vm917, %v914
        %920 = vst.msk [vmem:[%s369 + $0x10] sm:$0xff] %vm917, %v915
        %921 = vst.msk [vmem:[%s369 + $0x18] sm:$0xff] %vm917, %v916
        %s922 = sand.u32 %s252, 1
        %s923 = scalar_lea.sflag [#allocation3], %s922
        %s924 = sand.u32 %s252, 1
        %s925 = smul.addr %s924, 32
        %s926 = scalar_lea.vmem [#allocation2], %s925
        // Predicated region
        $region61: #{tpu_custom_call.1} parent=59 // pred_check
          %p927 = pneg %p262
        $region62: #{tpu_custom_call.1} parent=59 // pred_check_branch
          %929 = sbr.rel (%p927) target = $region64
        $region63: #{tpu_custom_call.1} parent=59 // pred_region
          %s930 = smul.u32 4, %s24
          %s932 = ssub.s32 512, 512
          %933 = vsyncadd %s923, %s932
          %s934 = smul.addr %s930, 128
          %s935 = scalar_lea.hbm %s10, %s934
          %s936 = sshll.u32 %s926, 4
          %s937 = int_to_ptr.vmem [resolvable:$true] %s936
          %942 = dma.vmem_to_hbm [thread:$0]  %s937, 512, %s935, %s923, 128, 128, 8
        $region64: #{tpu_custom_call.1} parent=59 // pred_fallthru
          _
      $region60: #{tpu_custom_call.1} parent=5 // pred_fallthru
        _
      %p943 = scmp.le.s32.totalorder 2, %s19
      // Predicated region
      $region65: #{tpu_custom_call.1} parent=5 // pred_check
        %p944 = pneg %p943
      $region66: #{tpu_custom_call.1} parent=5 // pred_check_branch
        %946 = sbr.rel (%p944) target = $region68
      $region67: #{tpu_custom_call.1} parent=5 // pred_region
        %s947 = ssub.s32 %s19, 2
        // Predicated region
        $region69: #{tpu_custom_call.1} parent=67 // pred_check
          %p948 = pneg %p268
        $region70: #{tpu_custom_call.1} parent=67 // pred_check_branch
          %950 = sbr.rel (%p948) target = $region72
        $region71: #{tpu_custom_call.1} parent=67 // pred_region
          %s951 = sand.u32 %s253, 1
          %s952 = scalar_lea.sflag [#allocation3], %s951
          %s953 = sand.u32 %s253, 1
          %s954 = smul.addr %s953, 32
          %s955 = scalar_lea.vmem [#allocation2], %s954
          %956 = dma.done %s952, 512
        $region72: #{tpu_custom_call.1} parent=67 // pred_fallthru
          _
      $region68: #{tpu_custom_call.1} parent=5 // pred_fallthru
        _
    $region6: #{tpu_custom_call.1} parent=1 // loop_footer
      %s23 = sadd.s32 1, %s19
    $region7: #{tpu_custom_call.1} parent=1 // loop_footer_branch
      %18 = sbr.rel target = $region3
    $region8: #{tpu_custom_call.1} parent=1 // loop_exit
      _
    %957 = vsyncpa [#allocation3], 1
    %s958 = scalar_lea.sflag [#allocation3], 1
    %959 = vsyncpa %s958, 1

</llo_original>
